<compile_context>
chip_gen: v6e
topology: v6e:2x2x1
jax: 0.10.0
libtpu: 0.0.40
codegen_flags: <defaults>
</compile_context>

<pallas_src>
import jax
import jax.numpy as jnp
from jax.experimental import pallas as pl
from jax.experimental.pallas import tpu as pltpu


def _round_up(x, m):
    return (x + m - 1) // m * m


def _sublane(dtype):
    # Minimum second-to-last tile dim per dtype packing.
    return {4: 8, 2: 16, 1: 32}.get(jnp.dtype(dtype).itemsize, 8)


def _lora_linear_kernel(scale_ref, x_ref, w_ref, b_ref, wd_ref, wu_ref,
                        o_ref, acc_ref, dacc_ref):
    """One (i, j, k) grid step.

    x_ref  : (tm, tk)        activations
    w_ref  : (tk, tn)        base weight (pre-transposed, row-major)
    b_ref  : (1,  tn)        bias
    wd_ref : (K_pad, R_pad)  LoRA down projection, fully resident
    wu_ref : (R_pad, tn)     LoRA up projection (pre-transposed)
    o_ref  : (tm, tn)        output tile
    acc_ref  : (tm, tn)      f32 scratch -- base matmul accumulator over k
    dacc_ref : (tm, R_pad)   f32 scratch -- LoRA down accumulator (built at j==0)
    """
    j = pl.program_id(1)
    k = pl.program_id(2)
    nk = pl.num_programs(2)
    tk = x_ref.shape[1]

    x = x_ref[...]
    base = jnp.dot(x, w_ref[...], preferred_element_type=jnp.float32)

    # First k step: assign and fold the bias in (no zero-fill pass).
    @pl.when(k == 0)
    def _():
        acc_ref[...] = base + b_ref[...].astype(jnp.float32)

    @pl.when(k != 0)
    def _():
        acc_ref[...] += base

    # LoRA down-projection: only computed on the first j pass for each i;
    # the scratch persists across the remaining j passes (requires the j grid
    # axis to be "arbitrary", i.e. not megacore-sharded).
    @pl.when(j == 0)
    def _():
        koff = pl.multiple_of(k * tk, tk)
        d = jnp.dot(x, wd_ref[pl.ds(koff, tk), :],
                    preferred_element_type=jnp.float32)

        @pl.when(k == 0)
        def _():
            dacc_ref[...] = d

        @pl.when(k != 0)
        def _():
            dacc_ref[...] += d

    # Epilogue: rank-wide up-projection + scale, single store of the tile.
    @pl.when(k == nk - 1)
    def _():
        scale = scale_ref[0, 0]
        lora = jnp.dot(dacc_ref[...], wu_ref[...].astype(jnp.float32),
                       preferred_element_type=jnp.float32)
        o_ref[...] = (acc_ref[...] + lora * scale).astype(o_ref.dtype)


def prepare_lora_params(w, b, w_down, w_up, *, tn=1024, tk=512,
                        param_dtype=None):
    """One-time weight prep (call OUTSIDE the per-step hot path).

    w:      [out_features, in_features]   (PyTorch nn.Linear convention)
    b:      [out_features]
    w_down: [rank, in_features]
    w_up:   [out_features, rank]
    param_dtype: optional storage dtype for weights (jnp.bfloat16 recommended
        on v6e/v7x -- halves HBM/VMEM traffic; accumulation stays f32).
    """
    N, K = w.shape
    R = w_down.shape[0]
    if param_dtype is not None:
        w = w.astype(param_dtype)
        b = b.astype(param_dtype)
        w_down = w_down.astype(param_dtype)
        w_up = w_up.astype(param_dtype)

    tn = min(tn, _round_up(N, 128))        # lane-dense output tiles
    tk = min(tk, _round_up(K, 128))
    N_pad = _round_up(N, tn)
    K_pad = _round_up(K, tk)
    R_pad = _round_up(R, 128)              # lane-dense LoRA rank

    def pad2(a, rows, cols):
        return jnp.pad(a, ((0, rows - a.shape[0]), (0, cols - a.shape[1])))

    return dict(
        w_t=pad2(w.T, K_pad, N_pad),           # [K_pad, N_pad]
        wd_t=pad2(w_down.T, K_pad, R_pad),     # [K_pad, R_pad]
        wu_t=pad2(w_up.T, R_pad, N_pad),       # [R_pad, N_pad]
        b2=pad2(b.reshape(1, N), 1, N_pad),    # [1, N_pad]
        N=N, K=K, R=R, R_pad=R_pad,
        tn=tn, tk=tk, N_pad=N_pad, K_pad=K_pad,
    )


def _vmem_budget_bytes():
    try:
        return int(pltpu.get_tpu_info().vmem_capacity_bytes * 0.65)
    except Exception:
        return 48 << 20    # conservative: safe on v5e / v6e / v7x


def lora_linear_apply(x, params, scale=1.0, *, tm=512):
    """x: [B, S, in_features]; params from prepare_lora_params()."""
    B, S, K = x.shape
    assert K == params["K"], "in_features mismatch"
    N, R_pad = params["N"], params["R_pad"]
    N_pad, K_pad = params["N_pad"], params["K_pad"]
    tn, tk = params["tn"], params["tk"]
    w_t, wd_t, wu_t, b2 = (params["w_t"], params["wd_t"],
                           params["wu_t"], params["b2"])

    it_x = jnp.dtype(x.dtype).itemsize
    it_w = jnp.dtype(w_t.dtype).itemsize

    M = B * S
    sub = _sublane(x.dtype)                       # 8 f32 / 16 bf16 / 32 int8
    tm = max(sub, min(tm, _round_up(M, sub)))
    tm = _round_up(tm, sub)

    budget = _vmem_budget_bytes()

    def footprint(tm_, tn_):
        streamed = (tm_ * tk * it_x               # x tile
                    + tk * tn_ * it_w             # W^T tile
                    + tn_ * it_w                  # bias
                    + R_pad * tn_ * it_w          # W_up^T tile
                    + tm_ * tn_ * it_x)           # output tile
        resident = K_pad * R_pad * it_w           # W_down^T (whole array)
        scratch = tm_ * tn_ * 4 + tm_ * R_pad * 4
        return 2 * (streamed + resident) + scratch

    # Shrink tiles if double-buffered footprint exceeds the VMEM budget, while
    # keeping lane/sublane density (tn stays a multiple of 128).
    while footprint(tm, tn) > budget:
        if tn >= tm and tn % 256 == 0:
            tn //= 2
        elif tm > sub:
            tm = _round_up(max(sub, tm // 2), sub)
        else:
            break

    M_pad = _round_up(M, tm)
    # Megacore (v7x has 2 TensorCores): give the parallel i axis >= 2 blocks
    # whenever M allows, so both cores get work.
    if M_pad // tm < 2 and M > sub:
        tm = _round_up(pl.cdiv(M, 2), sub)
        M_pad = _round_up(M, tm)

    x2 = x.reshape(M, K)
    if (M_pad, K_pad) != (M, K):
        x2 = jnp.pad(x2, ((0, M_pad - M), (0, K_pad - K)))

    scale_arr = jnp.full((1, 1), scale, dtype=jnp.float32)
    grid = (M_pad // tm, N_pad // tn, K_pad // tk)

    vmem_limit = int(min(budget, max(32 << 20, int(footprint(tm, tn) * 1.25))))

    # Cost estimate with the REAL streamed bytes: x re-streamed per j pass,
    # W^T per i pass, W_down^T fetched exactly once.
    flops = (2 * M_pad * N_pad * K_pad
             + 2 * M_pad * K_pad * R_pad
             + 2 * M_pad * R_pad * N_pad)
    bytes_accessed = ((N_pad // tn) * M_pad * K_pad * it_x
                      + (M_pad // tm) * K_pad * N_pad * it_w
                      + K_pad * R_pad * it_w
                      + (M_pad // tm) * (R_pad * N_pad + N_pad) * it_w
                      + M_pad * N_pad * it_x)

    out2 = pl.pallas_call(
        _lora_linear_kernel,
        out_shape=jax.ShapeDtypeStruct((M_pad, N_pad), x.dtype),
        grid_spec=pltpu.PrefetchScalarGridSpec(
            num_scalar_prefetch=0,
            grid=grid,
            in_specs=[
                pl.BlockSpec(memory_space=pltpu.MemorySpace.SMEM),     # scale
                pl.BlockSpec((tm, tk), lambda i, j, k: (i, k)),        # x
                pl.BlockSpec((tk, tn), lambda i, j, k: (k, j)),        # W^T
                pl.BlockSpec((1, tn), lambda i, j, k: (0, j)),         # bias
                pl.BlockSpec((K_pad, R_pad), lambda i, j, k: (0, 0)),  # W_down^T resident
                pl.BlockSpec((R_pad, tn), lambda i, j, k: (0, j)),     # W_up^T
            ],
            out_specs=pl.BlockSpec((tm, tn), lambda i, j, k: (i, j)),
            scratch_shapes=[
                pltpu.VMEM((tm, tn), jnp.float32),      # base accumulator
                pltpu.VMEM((tm, R_pad), jnp.float32),   # LoRA-down accumulator
            ],
        ),
        compiler_params=pltpu.CompilerParams(
            # j MUST be "arbitrary": the LoRA-down accumulator is built only on
            # the first j pass and reused, so j may not be megacore-sharded.
            dimension_semantics=("parallel", "arbitrary", "arbitrary"),
            vmem_limit_bytes=vmem_limit,
        ),
        cost_estimate=pl.CostEstimate(
            flops=flops, transcendentals=0, bytes_accessed=bytes_accessed),
    )(scale_arr, x2, w_t, b2, wd_t, wu_t)

    return out2[:M, :N].reshape(B, S, N)


def lora_linear(x, w, b, w_down, w_up, *, scale=1.0, tm=512, tn=1024, tk=512,
                param_dtype=None):
    """Convenience one-shot wrapper. For repeated calls with the same weights,
    call prepare_lora_params() once and reuse it with lora_linear_apply()."""
    params = prepare_lora_params(w, b, w_down, w_up, tn=tn, tk=tk,
                                 param_dtype=param_dtype)
    return lora_linear_apply(x, params, scale=scale, tm=tm)


if __name__ == "__main__":
    # Small shapes consistent with the module: [batch, seq, hidden] tokens.
    B, S = 2, 8
    in_features, out_features, rank = 32, 32, 4

    key = jax.random.PRNGKey(0)
    kx, kw, kb, kd, ku = jax.random.split(key, 5)

    x = jax.random.normal(kx, (B, S, in_features), dtype=jnp.float32)

    # Base nn.Linear params (torch-default-style uniform init).
    bound = 1.0 / (in_features ** 0.5)
    w = jax.random.uniform(kw, (out_features, in_features),
                           minval=-bound, maxval=bound, dtype=jnp.float32)
    b = jax.random.uniform(kb, (out_features,),
                           minval=-bound, maxval=bound, dtype=jnp.float32)

    # LoRA params.  NOTE: the module's __init__ zeros w_up (LoRA starts as a
    # no-op); use a nonzero w_up here so the LoRA branch is actually validated.
    w_down = (1.0 / rank) * jax.random.normal(
        kd, (rank, in_features), dtype=jnp.float32)
    w_up = 0.1 * jax.random.normal(ku, (out_features, rank), dtype=jnp.float32)
    scale = 1.0

    params = prepare_lora_params(w, b, w_down, w_up)   # one-time, off hot path
    out = lora_linear_apply(x, params, scale=scale)
    out = jax.block_until_ready(out)

    # Pure-JAX reference.
    x2 = x.reshape(-1, in_features)
    ref = (x2 @ w.T + b + ((x2 @ w_down.T) @ w_up.T) * scale
           ).reshape(B, S, out_features)
    assert jnp.allclose(out, ref, atol=1e-4, rtol=1e-4), "mismatch vs reference"

    print("KERNEL_OK")
</pallas_src>

<mosaic_0001>
module attributes {stable_mosaic.version = 11 : i64} {
  func.func @_lora_linear_kernel(%arg0: i32, %arg1: i32, %arg2: i32, %arg3: memref<1x1xf32, #tpu.memory_space<smem>>, %arg4: memref<8x128xf32, #tpu.memory_space<vmem>>, %arg5: memref<128x128xf32, #tpu.memory_space<vmem>>, %arg6: memref<1x128xf32, #tpu.memory_space<vmem>>, %arg7: memref<128x128xf32, #tpu.memory_space<vmem>>, %arg8: memref<128x128xf32, #tpu.memory_space<vmem>>, %arg9: memref<8x128xf32, #tpu.memory_space<vmem>>, %arg10: memref<8x128xf32, #tpu.memory_space<vmem>>, %arg11: memref<8x128xf32, #tpu.memory_space<vmem>>) attributes {dimension_semantics = [#tpu.dimension_semantics<parallel>, #tpu.dimension_semantics<arbitrary>, #tpu.dimension_semantics<arbitrary>], iteration_bounds = array<i64: 2, 1, 1>, scalar_prefetch = 0 : i64, scratch_operands = 2 : i64, tpu.core_type = #tpu.core_type<tc>, window_params = [{transform_indices = @transform_0, window_bounds = array<i64: 1, 1>}, {transform_indices = @transform_1, window_bounds = array<i64: 8, 128>}, {transform_indices = @transform_2, window_bounds = array<i64: 128, 128>}, {transform_indices = @transform_3, window_bounds = array<i64: 1, 128>}, {pipeline_mode = #tpu.pipeline_mode<synchronous>, transform_indices = @transform_4, window_bounds = array<i64: 128, 128>}, {transform_indices = @transform_5, window_bounds = array<i64: 128, 128>}, {transform_indices = @transform_6, window_bounds = array<i64: 8, 128>}]} {
    %c0 = arith.constant 0 : index
    %c0_0 = arith.constant 0 : index
    %0 = vector.load %arg4[%c0, %c0_0] : memref<8x128xf32, #tpu.memory_space<vmem>>, vector<8x128xf32>
    %c0_1 = arith.constant 0 : index
    %c0_2 = arith.constant 0 : index
    %1 = vector.load %arg5[%c0_1, %c0_2] : memref<128x128xf32, #tpu.memory_space<vmem>>, vector<128x128xf32>
    %cst = arith.constant dense<0.000000e+00> : vector<8x128xf32>
    %2 = tpu.matmul %0, %1, %cst {dimension_numbers = #tpu.dot_dimension_numbers<[1], [0], [0], [1], [0, 0, 1, 1], [], []>} : vector<8x128xf32>, vector<128x128xf32>, vector<8x128xf32> -> vector<8x128xf32>
    %c0_i32 = arith.constant 0 : i32
    %3 = arith.cmpi eq, %arg2, %c0_i32 : i32
    %4 = arith.extui %3 : i1 to i32
    %c0_i32_3 = arith.constant 0 : i32
    %5 = arith.cmpi ne, %4, %c0_i32_3 : i32
    scf.if %5 {
      %c0_10 = arith.constant 0 : index
      %c0_11 = arith.constant 0 : index
      %15 = vector.load %arg6[%c0_10, %c0_11] : memref<1x128xf32, #tpu.memory_space<vmem>>, vector<1x128xf32>
      %16 = vector.broadcast %15 : vector<1x128xf32> to vector<8x128xf32>
      %17 = arith.addf %2, %16 : vector<8x128xf32>
      %c0_12 = arith.constant 0 : index
      %c0_13 = arith.constant 0 : index
      %18 = vector.load %arg10[%c0_12, %c0_13] : memref<8x128xf32, #tpu.memory_space<vmem>>, vector<8x128xf32>
      tpu.vector_store %arg10[%c0_12, %c0_13], %17 {strides = array<i32>} : memref<8x128xf32, #tpu.memory_space<vmem>>, vector<8x128xf32>,
    } else {
    }
    %c0_i32_4 = arith.constant 0 : i32
    %6 = arith.cmpi ne, %arg2, %c0_i32_4 : i32
    %7 = arith.extui %6 : i1 to i32
    %c0_i32_5 = arith.constant 0 : i32
    %8 = arith.cmpi ne, %7, %c0_i32_5 : i32
    scf.if %8 {
      %c0_10 = arith.constant 0 : index
      %c0_11 = arith.constant 0 : index
      %15 = vector.load %arg10[%c0_10, %c0_11] : memref<8x128xf32, #tpu.memory_space<vmem>>, vector<8x128xf32>
      %16 = arith.addf %15, %2 : vector<8x128xf32>
      %c0_12 = arith.constant 0 : index
      %c0_13 = arith.constant 0 : index
      %17 = vector.load %arg10[%c0_12, %c0_13] : memref<8x128xf32, #tpu.memory_space<vmem>>, vector<8x128xf32>
      tpu.vector_store %arg10[%c0_12, %c0_13], %16 {strides = array<i32>} : memref<8x128xf32, #tpu.memory_space<vmem>>, vector<8x128xf32>,
    } else {
    }
    %c0_i32_6 = arith.constant 0 : i32
    %9 = arith.cmpi eq, %arg1, %c0_i32_6 : i32
    %10 = arith.extui %9 : i1 to i32
    %c0_i32_7 = arith.constant 0 : i32
    %11 = arith.cmpi ne, %10, %c0_i32_7 : i32
    scf.if %11 {
      %c128_i32 = arith.constant 128 : i32
      %15 = arith.muli %arg2, %c128_i32 : i32
      %16 = tpu.assume_multiple %15, 128 : i32
      %17 = arith.index_cast %16 : i32 to index
      %c0_10 = arith.constant 0 : index
      %18 = vector.load %arg7[%17, %c0_10] : memref<128x128xf32, #tpu.memory_space<vmem>>, vector<128x128xf32>
      %cst_11 = arith.constant dense<0.000000e+00> : vector<8x128xf32>
      %19 = tpu.matmul %0, %18, %cst_11 {dimension_numbers = #tpu.dot_dimension_numbers<[1], [0], [0], [1], [0, 0, 1, 1], [], []>} : vector<8x128xf32>, vector<128x128xf32>, vector<8x128xf32> -> vector<8x128xf32>
      %c0_i32_12 = arith.constant 0 : i32
      %20 = arith.cmpi eq, %arg2, %c0_i32_12 : i32
      %21 = arith.extui %20 : i1 to i32
      %c0_i32_13 = arith.constant 0 : i32
      %22 = arith.cmpi ne, %21, %c0_i32_13 : i32
      scf.if %22 {
        %c0_16 = arith.constant 0 : index
        %c0_17 = arith.constant 0 : index
        %26 = vector.load %arg11[%c0_16, %c0_17] : memref<8x128xf32, #tpu.memory_space<vmem>>, vector<8x128xf32>
        tpu.vector_store %arg11[%c0_16, %c0_17], %19 {strides = array<i32>} : memref<8x128xf32, #tpu.memory_space<vmem>>, vector<8x128xf32>,
      } else {
      }
      %c0_i32_14 = arith.constant 0 : i32
      %23 = arith.cmpi ne, %arg2, %c0_i32_14 : i32
      %24 = arith.extui %23 : i1 to i32
      %c0_i32_15 = arith.constant 0 : i32
      %25 = arith.cmpi ne, %24, %c0_i32_15 : i32
      scf.if %25 {
        %c0_16 = arith.constant 0 : index
        %c0_17 = arith.constant 0 : index
        %26 = vector.load %arg11[%c0_16, %c0_17] : memref<8x128xf32, #tpu.memory_space<vmem>>, vector<8x128xf32>
        %27 = arith.addf %26, %19 : vector<8x128xf32>
        %c0_18 = arith.constant 0 : index
        %c0_19 = arith.constant 0 : index
        %28 = vector.load %arg11[%c0_18, %c0_19] : memref<8x128xf32, #tpu.memory_space<vmem>>, vector<8x128xf32>
        tpu.vector_store %arg11[%c0_18, %c0_19], %27 {strides = array<i32>} : memref<8x128xf32, #tpu.memory_space<vmem>>, vector<8x128xf32>,
      } else {
      }
    } else {
    }
    %c0_i32_8 = arith.constant 0 : i32
    %12 = arith.cmpi eq, %arg2, %c0_i32_8 : i32
    %13 = arith.extui %12 : i1 to i32
    %c0_i32_9 = arith.constant 0 : i32
    %14 = arith.cmpi ne, %13, %c0_i32_9 : i32
    scf.if %14 {
      %c0_10 = arith.constant 0 : index
      %c0_11 = arith.constant 0 : index
      %15 = memref.load %arg3[%c0_10, %c0_11] : memref<1x1xf32, #tpu.memory_space<smem>>
      %c0_12 = arith.constant 0 : index
      %c0_13 = arith.constant 0 : index
      %16 = vector.load %arg11[%c0_12, %c0_13] : memref<8x128xf32, #tpu.memory_space<vmem>>, vector<8x128xf32>
      %c0_14 = arith.constant 0 : index
      %c0_15 = arith.constant 0 : index
      %17 = vector.load %arg8[%c0_14, %c0_15] : memref<128x128xf32, #tpu.memory_space<vmem>>, vector<128x128xf32>
      %cst_16 = arith.constant dense<0.000000e+00> : vector<8x128xf32>
      %18 = tpu.matmul %16, %17, %cst_16 {dimension_numbers = #tpu.dot_dimension_numbers<[1], [0], [0], [1], [0, 0, 1, 1], [], []>} : vector<8x128xf32>, vector<128x128xf32>, vector<8x128xf32> -> vector<8x128xf32>
      %c0_17 = arith.constant 0 : index
      %c0_18 = arith.constant 0 : index
      %19 = vector.load %arg10[%c0_17, %c0_18] : memref<8x128xf32, #tpu.memory_space<vmem>>, vector<8x128xf32>
      %20 = vector.broadcast %15 : f32 to vector<8x128xf32>
      %21 = arith.mulf %18, %20 : vector<8x128xf32>
      %22 = arith.addf %19, %21 : vector<8x128xf32>
      %c0_19 = arith.constant 0 : index
      %c0_20 = arith.constant 0 : index
      %23 = vector.load %arg9[%c0_19, %c0_20] : memref<8x128xf32, #tpu.memory_space<vmem>>, vector<8x128xf32>
      tpu.vector_store %arg9[%c0_19, %c0_20], %22 {strides = array<i32>} : memref<8x128xf32, #tpu.memory_space<vmem>>, vector<8x128xf32>,
    } else {
    }
    return
  }
  func.func @transform_0(%arg0: i32, %arg1: i32, %arg2: i32) -> (i32, i32) {
    %c0_i32 = arith.constant 0 : i32
    %c0_i32_0 = arith.constant 0 : i32
    %c0_i32_1 = arith.constant 0 : i32
    return %c0_i32, %c0_i32_0 : i32, i32
  }
  func.func @transform_1(%arg0: i32, %arg1: i32, %arg2: i32) -> (i32, i32) {
    %c0_i32 = arith.constant 0 : i32
    return %arg0, %arg2 : i32, i32
  }
  func.func @transform_2(%arg0: i32, %arg1: i32, %arg2: i32) -> (i32, i32) {
    %c0_i32 = arith.constant 0 : i32
    return %arg2, %arg1 : i32, i32
  }
  func.func @transform_3(%arg0: i32, %arg1: i32, %arg2: i32) -> (i32, i32) {
    %c0_i32 = arith.constant 0 : i32
    %c0_i32_0 = arith.constant 0 : i32
    return %c0_i32, %arg1 : i32, i32
  }
  func.func @transform_4(%arg0: i32, %arg1: i32, %arg2: i32) -> (i32, i32) {
    %c0_i32 = arith.constant 0 : i32
    %c0_i32_0 = arith.constant 0 : i32
    %c0_i32_1 = arith.constant 0 : i32
    return %c0_i32, %c0_i32_0 : i32, i32
  }
  func.func @transform_5(%arg0: i32, %arg1: i32, %arg2: i32) -> (i32, i32) {
    %c0_i32 = arith.constant 0 : i32
    %c0_i32_0 = arith.constant 0 : i32
    return %c0_i32, %arg1 : i32, i32
  }
  func.func @transform_6(%arg0: i32, %arg1: i32, %arg2: i32) -> (i32, i32) {
    %c0_i32 = arith.constant 0 : i32
    return %arg0, %arg1 : i32, i32
  }
}

</mosaic_0001>

<llo_original>
// kernel: tpu_custom_call.1
$region0: #{tpu_custom_call.1}
  #allocation0 [shape = 'u32[]', space=smem, size = 0x4, offset = 0x4, fixed_abs, tag = 'smem constant byte address 0x4 - core index']
  #allocation1 [shape = 'u32[144,128]{1,0:T(1,128)}', space=vmem, size = 0x12000, scoped, tag = 'internal scratch']
  #allocation2 [shape = 'f32[8,128]{1,0:T(8,128)}', space=vmem, size = 0x1000, scoped, tag = 'scratch operand']
  #allocation3 [shape = 'f32[8,128]{1,0:T(8,128)}', space=vmem, size = 0x1000, scoped, tag = 'scratch operand']
  #allocation4 [shape = 'f32[1,1]{1,0:T(1,128)S(6)}', space=smem, size = 0x200, scoped, tag = 'scoped memory for tpu_custom_call.1']
  %s0 = inlined_call_operand.<no memory space> [shape: f32[1,1], index: 0, kind: input, shape index: {}]
  %s1 = inlined_call_operand.hbm [shape: f32[16,128], index: 1, kind: input, shape index: {}]
  %s2 = inlined_call_operand.hbm [shape: f32[128,128], index: 2, kind: input, shape index: {}]
  %s3 = inlined_call_operand.vmem [shape: f32[1,128], index: 3, kind: input, shape index: {}]
  %s4 = inlined_call_operand.hbm [shape: f32[128,128], index: 4, kind: input, shape index: {}]
  %s5 = inlined_call_operand.hbm [shape: f32[128,128], index: 5, kind: input, shape index: {}]
  %s6 = inlined_call_operand.hbm [shape: f32[16,128], index: 6, kind: output, shape index: {}]
  %s7 = sld [smem:[#allocation0]]
  $region97: #{tpu_custom_call.1} parent=0
    _
  %s9 = ssub.s32 1, %s7
  %s10 = scalar_select 0, %s9, %s7
  %11 = sst [smem:[#allocation4]] %s0
  $region1: #{tpu_custom_call.1} parent=0
    #allocation5 [shape = 'u8[8192]{0}', space=vmem, size = 0x2000, scoped, tag = 'input window, operand 1']
    #allocation6 [shape = 's32[2]{0}', space=sflag, size = 0x8, scoped, tag = 'scoped memory for tpu_custom_call.1']
    #allocation7 [shape = 's32[2]{0}', space=sflag, size = 0x8, scoped, tag = 'scoped memory for tpu_custom_call.1']
    #allocation8 [shape = 'u8[65536]{0}', space=vmem, size = 0x10000, scoped, tag = 'input window, operand 2, single buffered']
    #allocation9 [shape = 's32[1]{0}', space=sflag, size = 0x4, scoped, tag = 'scoped memory for tpu_custom_call.1']
    #allocation10 [shape = 'u8[65536]{0}', space=vmem, size = 0x10000, scoped, tag = 'input window, operand 4, single buffered']
    #allocation11 [shape = 'u8[65536]{0}', space=vmem, size = 0x10000, scoped, tag = 'input window, operand 5, single buffered']
    #allocation12 [shape = 's32[1]{0}', space=sflag, size = 0x4, scoped, tag = 'scoped memory for tpu_custom_call.1']
    #allocation13 [shape = 'u8[8192]{0}', space=vmem, size = 0x2000, scoped, tag = 'output window, operand 0']
    %12 = vsyncpa [#allocation6], 0
    %s13 = scalar_lea.sflag [#allocation6], 1
    %14 = vsyncpa %s13, 0
    %15 = vsyncpa [#allocation9], 0
    %16 = vsyncpa [#allocation12], 0
    %17 = vsyncpa [#allocation7], 0
    %s18 = scalar_lea.sflag [#allocation7], 1
    %19 = vsyncpa %s18, 0
    loop: start=0, step=1, limit=4
    $region2: #{tpu_custom_call.1} parent=1 // loop_pre_header
      _
    $region3: #{tpu_custom_call.1} parent=1 // loop_header
      %s21 = sphi 0, %s25
      %p22 = scmp.ge.s32.totalorder %s21, 4
      %s28 = sphi 0, %s47
      %s29 = sphi 0, %s43
      %s30 = sphi 0, %s39
      %s31 = sphi 0, %s28
      %s32 = sphi 0, %s29
      %s33 = sphi 0, %s30
      %s34 = sphi 0, %s31
      %s35 = sphi 0, %s32
      %s36 = sphi 0, %s33
      %s48 = sphi 0, %s48
      %s50 = sphi 0, %s48
      %s51 = sphi 0, %s50
      %s65 = sphi 0, %s51
      %s73 = sphi 0, %s75
      %s76 = sphi 0, %s73
      %s77 = sphi 0, %s76
      %s93 = sphi 0, %s77
      %s101 = sphi 0, %s103
      %s104 = sphi 0, %s101
      %s105 = sphi 0, %s104
      %s121 = sphi 0, %s105
      %s127 = sphi 0, %s129
      %s130 = sphi 0, %s127
      %s131 = sphi 0, %s130
      %s147 = sphi 0, %s131
      %s151 = sphi 0, %s151
      %s153 = sphi 0, %s151
      %s154 = sphi 0, %s153
      %s168 = sphi 0, %s154
      %s174 = sphi 0, %s176
      %s177 = sphi 0, %s174
      %s178 = sphi 0, %s177
      %s194 = sphi 0, %s178
      %s202 = sphi 0, %s204
      %s205 = sphi 0, %s202
      %s206 = sphi 0, %s205
      %s222 = sphi 0, %s206
    $region4: #{tpu_custom_call.1} parent=1 // loop_header_branch
      %24 = sbr.rel (%p22) target = $region8
    $region5: #{tpu_custom_call.1} parent=1 // loop_body
      %s26 = ssub.s32 %s21, 1
      %s27 = ssub.s32 %s21, 2
      %s37 = sadd.s32 1, %s30
      %p38 = scmp.ge.s32.totalorder %s37, 1
      %s39 = scalar_select %p38, 0, %s37
      %s40 = sadd.s32 1, %s29
      %s41 = scalar_select %p38, %s40, %s29
      %p42 = scmp.ge.s32.totalorder %s41, 1
      %s43 = scalar_select %p42, 0, %s41
      %s44 = sadd.s32 1, %s28
      %s45 = scalar_select %p42, %s44, %s28
      %p46 = scmp.ge.s32.totalorder %s45, 2
      %s47 = scalar_select %p46, 0, %s45
      %s49 = sadd.s32 %s48, 1
      %p52 = scmp.eq.s32.totalorder %s21, 1
      %p53 = scmp.ne.s32.totalorder %s48, %s50
      %p54 = scmp.eq.s32.totalorder %s21, 0
      %p55 = por %p53, %p54
      %p56 = scmp.ne.s32.totalorder %s48, %s50
      %p57 = scmp.eq.s32.totalorder %s26, 1
      %p58 = por %p56, %p57
      %p59 = scmp.ne.s32.totalorder %s50, %s51
      %p60 = scmp.eq.s32.totalorder %s26, 0
      %p61 = por %p59, %p60
      %p62 = scmp.ne.s32.totalorder %s50, %s51
      %p63 = scmp.eq.s32.totalorder %s27, 1
      %p64 = por %p62, %p63
      %p66 = scmp.ne.s32.totalorder %s51, %s65
      %p67 = scmp.eq.s32.totalorder %s27, 0
      %p68 = por %p66, %p67
      %s69 = ssub.s32 %s28, %s47
      %s70 = ssub.s32 %s30, %s39
      %s71 = sor.u32 %s69, %s70
      %p72 = scmp.eq.s32.totalorder %s71, 0
      %s74 = sadd.s32 %s73, 1
      %s75 = scalar_select %p72, %s73, %s74
      %p78 = pneg %p72
      %p79 = scmp.eq.s32.totalorder %s21, 1
      %p80 = por %p78, %p79
      %p81 = scmp.ne.s32.totalorder %s73, %s76
      %p82 = scmp.eq.s32.totalorder %s21, 0
      %p83 = por %p81, %p82
      %p84 = scmp.ne.s32.totalorder %s73, %s76
      %p85 = scmp.eq.s32.totalorder %s26, 1
      %p86 = por %p84, %p85
      %p87 = scmp.ne.s32.totalorder %s76, %s77
      %p88 = scmp.eq.s32.totalorder %s26, 0
      %p89 = por %p87, %p88
      %p90 = scmp.ne.s32.totalorder %s76, %s77
      %p91 = scmp.eq.s32.totalorder %s27, 1
      %p92 = por %p90, %p91
      %p94 = scmp.ne.s32.totalorder %s77, %s93
      %p95 = scmp.eq.s32.totalorder %s27, 0
      %p96 = por %p94, %p95
      %s97 = ssub.s32 %s30, %s39
      %s98 = ssub.s32 %s29, %s43
      %s99 = sor.u32 %s97, %s98
      %p100 = scmp.eq.s32.totalorder %s99, 0
      %s102 = sadd.s32 %s101, 1
      %s103 = scalar_select %p100, %s101, %s102
      %p106 = pneg %p100
      %p107 = scmp.eq.s32.totalorder %s21, 1
      %p108 = por %p106, %p107
      %p109 = scmp.ne.s32.totalorder %s101, %s104
      %p110 = scmp.eq.s32.totalorder %s21, 0
      %p111 = por %p109, %p110
      %p112 = scmp.ne.s32.totalorder %s101, %s104
      %p113 = scmp.eq.s32.totalorder %s26, 1
      %p114 = por %p112, %p113
      %p115 = scmp.ne.s32.totalorder %s104, %s105
      %p116 = scmp.eq.s32.totalorder %s26, 0
      %p117 = por %p115, %p116
      %p118 = scmp.ne.s32.totalorder %s104, %s105
      %p119 = scmp.eq.s32.totalorder %s27, 1
      %p120 = por %p118, %p119
      %p122 = scmp.ne.s32.totalorder %s105, %s121
      %p123 = scmp.eq.s32.totalorder %s27, 0
      %p124 = por %p122, %p123
      %s125 = ssub.s32 %s29, %s43
      %p126 = scmp.eq.s32.totalorder %s125, 0
      %s128 = sadd.s32 %s127, 1
      %s129 = scalar_select %p126, %s127, %s128
      %p132 = pneg %p126
      %p133 = scmp.eq.s32.totalorder %s21, 1
      %p134 = por %p132, %p133
      %p135 = scmp.ne.s32.totalorder %s127, %s130
      %p136 = scmp.eq.s32.totalorder %s21, 0
      %p137 = por %p135, %p136
      %p138 = scmp.ne.s32.totalorder %s127, %s130
      %p139 = scmp.eq.s32.totalorder %s26, 1
      %p140 = por %p138, %p139
      %p141 = scmp.ne.s32.totalorder %s130, %s131
      %p142 = scmp.eq.s32.totalorder %s26, 0
      %p143 = por %p141, %p142
      %p144 = scmp.ne.s32.totalorder %s130, %s131
      %p145 = scmp.eq.s32.totalorder %s27, 1
      %p146 = por %p144, %p145
      %p148 = scmp.ne.s32.totalorder %s131, %s147
      %p149 = scmp.eq.s32.totalorder %s27, 0
      %p150 = por %p148, %p149
      %s152 = sadd.s32 %s151, 1
      %p155 = scmp.eq.s32.totalorder %s21, 1
      %p156 = scmp.ne.s32.totalorder %s151, %s153
      %p157 = scmp.eq.s32.totalorder %s21, 0
      %p158 = por %p156, %p157
      %p159 = scmp.ne.s32.totalorder %s151, %s153
      %p160 = scmp.eq.s32.totalorder %s26, 1
      %p161 = por %p159, %p160
      %p162 = scmp.ne.s32.totalorder %s153, %s154
      %p163 = scmp.eq.s32.totalorder %s26, 0
      %p164 = por %p162, %p163
      %p165 = scmp.ne.s32.totalorder %s153, %s154
      %p166 = scmp.eq.s32.totalorder %s27, 1
      %p167 = por %p165, %p166
      %p169 = scmp.ne.s32.totalorder %s154, %s168
      %p170 = scmp.eq.s32.totalorder %s27, 0
      %p171 = por %p169, %p170
      %s172 = ssub.s32 %s29, %s43
      %p173 = scmp.eq.s32.totalorder %s172, 0
      %s175 = sadd.s32 %s174, 1
      %s176 = scalar_select %p173, %s174, %s175
      %p179 = pneg %p173
      %p180 = scmp.eq.s32.totalorder %s21, 1
      %p181 = por %p179, %p180
      %p182 = scmp.ne.s32.totalorder %s174, %s177
      %p183 = scmp.eq.s32.totalorder %s21, 0
      %p184 = por %p182, %p183
      %p185 = scmp.ne.s32.totalorder %s174, %s177
      %p186 = scmp.eq.s32.totalorder %s26, 1
      %p187 = por %p185, %p186
      %p188 = scmp.ne.s32.totalorder %s177, %s178
      %p189 = scmp.eq.s32.totalorder %s26, 0
      %p190 = por %p188, %p189
      %p191 = scmp.ne.s32.totalorder %s177, %s178
      %p192 = scmp.eq.s32.totalorder %s27, 1
      %p193 = por %p191, %p192
      %p195 = scmp.ne.s32.totalorder %s178, %s194
      %p196 = scmp.eq.s32.totalorder %s27, 0
      %p197 = por %p195, %p196
      %s198 = ssub.s32 %s28, %s47
      %s199 = ssub.s32 %s29, %s43
      %s200 = sor.u32 %s198, %s199
      %p201 = scmp.eq.s32.totalorder %s200, 0
      %s203 = sadd.s32 %s202, 1
      %s204 = scalar_select %p201, %s202, %s203
      %p207 = pneg %p201
      %p208 = scmp.eq.s32.totalorder %s21, 1
      %p209 = por %p207, %p208
      %p210 = scmp.ne.s32.totalorder %s202, %s205
      %p211 = scmp.eq.s32.totalorder %s21, 0
      %p212 = por %p210, %p211
      %p213 = scmp.ne.s32.totalorder %s202, %s205
      %p214 = scmp.eq.s32.totalorder %s26, 1
      %p215 = por %p213, %p214
      %p216 = scmp.ne.s32.totalorder %s205, %s206
      %p217 = scmp.eq.s32.totalorder %s26, 0
      %p218 = por %p216, %p217
      %p219 = scmp.ne.s32.totalorder %s205, %s206
      %p220 = scmp.eq.s32.totalorder %s27, 1
      %p221 = por %p219, %p220
      %p223 = scmp.ne.s32.totalorder %s206, %s222
      %p224 = scmp.eq.s32.totalorder %s27, 0
      %p225 = por %p223, %p224
      %p226 = scmp.le.s32.totalorder 1, %s21
      %p227 = scmp.lt.s32.totalorder %s21, 3
      %p228 = pnand %p226, %p227
      %p229 = pneg %p228
      // Predicated region
      $region9: #{tpu_custom_call.1} parent=5 // pred_check
        _
      $region10: #{tpu_custom_call.1} parent=5 // pred_check_branch
        %231 = sbr.rel (%p228) target = $region12
      $region11: #{tpu_custom_call.1} parent=5 // pred_region
        %s232 = ssub.s32 %s21, 1
        // Predicated region
        $region13: #{tpu_custom_call.1} parent=11 // pred_check
          %p233 = pneg %p61
        $region14: #{tpu_custom_call.1} parent=11 // pred_check_branch
          %235 = sbr.rel (%p233) target = $region16
        $region15: #{tpu_custom_call.1} parent=11 // pred_region
          _
        $region16: #{tpu_custom_call.1} parent=11 // pred_fallthru
          _
        // Predicated region
        $region17: #{tpu_custom_call.1} parent=11 // pred_check
          %p236 = pneg %p117
        $region18: #{tpu_custom_call.1} parent=11 // pred_check_branch
          %238 = sbr.rel (%p236) target = $region20
        $region19: #{tpu_custom_call.1} parent=11 // pred_region
          %s239 = smul.u32 16, %s33
          %s241 = ssub.s32 2048, 2048
          %242 = vsyncadd [#allocation9], %s241
          %s243 = sadd.s32 %s32, %s239
          %s244 = smul.addr %s243, 128
          %s245 = scalar_lea.hbm %s2, %s244
          %s246 = sshll.u32 [#allocation8], 4
          %s247 = int_to_ptr.vmem [resolvable:$true] %s246
          %252 = dma.hbm_to_vmem [thread:$0]  %s245, 2048, %s247, [#allocation9], 128, 128, 8
        $region20: #{tpu_custom_call.1} parent=11 // pred_fallthru
          _
        // Predicated region
        $region21: #{tpu_custom_call.1} parent=11 // pred_check
          %p253 = pneg %p143
        $region22: #{tpu_custom_call.1} parent=11 // pred_check_branch
          %255 = sbr.rel (%p253) target = $region24
        $region23: #{tpu_custom_call.1} parent=11 // pred_region
          %p256 = scmp.lt.s32.totalorder %s32, 0
          %s257 = scalar_select %p256, %s32, 0
          %s258 = scalar_lea.vmem %s3, %s257
        $region24: #{tpu_custom_call.1} parent=11 // pred_fallthru
          _
        // Predicated region
        $region25: #{tpu_custom_call.1} parent=11 // pred_check
          %p259 = pneg %p164
        $region26: #{tpu_custom_call.1} parent=11 // pred_check_branch
          %261 = sbr.rel (%p259) target = $region28
        $region27: #{tpu_custom_call.1} parent=11 // pred_region
          %s263 = ssub.s32 2048, 2048
          %264 = vsyncadd [#allocation9], %s263
          %s265 = sshll.u32 [#allocation10], 4
          %s266 = int_to_ptr.vmem [resolvable:$true] %s265
          %271 = dma.hbm_to_vmem [thread:$0]  %s4, 2048, %s266, [#allocation9], 128, 128, 8
        $region28: #{tpu_custom_call.1} parent=11 // pred_fallthru
          _
        // Predicated region
        $region29: #{tpu_custom_call.1} parent=11 // pred_check
          %p272 = pneg %p190
        $region30: #{tpu_custom_call.1} parent=11 // pred_check_branch
          %274 = sbr.rel (%p272) target = $region32
        $region31: #{tpu_custom_call.1} parent=11 // pred_region
          %s276 = ssub.s32 2048, 2048
          %277 = vsyncadd [#allocation12], %s276
          %s278 = smul.addr %s32, 128
          %s279 = scalar_lea.hbm %s5, %s278
          %s280 = sshll.u32 [#allocation11], 4
          %s281 = int_to_ptr.vmem [resolvable:$true] %s280
          %286 = dma.hbm_to_vmem [thread:$0]  %s279, 2048, %s281, [#allocation12], 128, 128, 8
        $region32: #{tpu_custom_call.1} parent=11 // pred_fallthru
          _
      $region12: #{tpu_custom_call.1} parent=5 // pred_fallthru
        _
      %p287 = scmp.lt.s32.totalorder %s21, 2
      // Predicated region
      $region33: #{tpu_custom_call.1} parent=5 // pred_check
        %p288 = pneg %p287
      $region34: #{tpu_custom_call.1} parent=5 // pred_check_branch
        %290 = sbr.rel (%p288) target = $region36
      $region35: #{tpu_custom_call.1} parent=5 // pred_region
        // Predicated region
        $region37: #{tpu_custom_call.1} parent=35 // pred_check
          %p291 = pneg %p83
        $region38: #{tpu_custom_call.1} parent=35 // pred_check_branch
          %293 = sbr.rel (%p291) target = $region40
        $region39: #{tpu_custom_call.1} parent=35 // pred_region
          %s294 = sand.u32 %s73, 1
          %s295 = scalar_lea.sflag [#allocation6], %s294
          %s296 = sand.u32 %s73, 1
          %s297 = smul.addr %s296, 8
          %s298 = scalar_lea.vmem [#allocation5], %s297
          %s300 = ssub.s32 128, 128
          %301 = vsyncadd %s295, %s300
          %s302 = sadd.s32 %s30, %s28
          %s303 = smul.addr %s302, 128
          %s304 = scalar_lea.hbm %s1, %s303
          %s306 = sshll.u32 %s298, 4
          %s307 = int_to_ptr.vmem [resolvable:$true] %s306
          %309 = dma.hbm_to_vmem [thread:$0]  %s304, 128, %s307, %s295
        $region40: #{tpu_custom_call.1} parent=35 // pred_fallthru
          _
      $region36: #{tpu_custom_call.1} parent=5 // pred_fallthru
        _
      %p310 = scmp.le.s32.totalorder 1, %s21
      %p311 = scmp.lt.s32.totalorder %s21, 3
      %p312 = pnand %p310, %p311
      %p313 = pneg %p312
      // Predicated region
      $region41: #{tpu_custom_call.1} parent=5 // pred_check
        _
      $region42: #{tpu_custom_call.1} parent=5 // pred_check_branch
        %315 = sbr.rel (%p312) target = $region44
      $region43: #{tpu_custom_call.1} parent=5 // pred_region
        %s316 = ssub.s32 %s21, 1
        %s317 = sand.u32 %s76, 1
        %s318 = scalar_lea.sflag [#allocation6], %s317
        %s319 = sand.u32 %s76, 1
        %s320 = smul.addr %s319, 8
        %s321 = scalar_lea.vmem [#allocation5], %s320
        // Predicated region
        $region45: #{tpu_custom_call.1} parent=43 // pred_check
          %p322 = pneg %p89
        $region46: #{tpu_custom_call.1} parent=43 // pred_check_branch
          %324 = sbr.rel (%p322) target = $region48
        $region47: #{tpu_custom_call.1} parent=43 // pred_region
          %325 = dma.done %s318, 128
        $region48: #{tpu_custom_call.1} parent=43 // pred_fallthru
          _
        // Predicated region
        $region49: #{tpu_custom_call.1} parent=43 // pred_check
          %p326 = pneg %p117
        $region50: #{tpu_custom_call.1} parent=43 // pred_check_branch
          %328 = sbr.rel (%p326) target = $region52
        $region51: #{tpu_custom_call.1} parent=43 // pred_region
          %329 = dma.done [#allocation9], 2048
        $region52: #{tpu_custom_call.1} parent=43 // pred_fallthru
          _
        // Predicated region
        $region53: #{tpu_custom_call.1} parent=43 // pred_check
          %p330 = pneg %p164
        $region54: #{tpu_custom_call.1} parent=43 // pred_check_branch
          %332 = sbr.rel (%p330) target = $region56
        $region55: #{tpu_custom_call.1} parent=43 // pred_region
          %333 = dma.done [#allocation9], 2048
        $region56: #{tpu_custom_call.1} parent=43 // pred_fallthru
          _
        // Predicated region
        $region57: #{tpu_custom_call.1} parent=43 // pred_check
          %p334 = pneg %p190
        $region58: #{tpu_custom_call.1} parent=43 // pred_check_branch
          %336 = sbr.rel (%p334) target = $region60
        $region59: #{tpu_custom_call.1} parent=43 // pred_region
          %337 = dma.done [#allocation12], 2048
        $region60: #{tpu_custom_call.1} parent=43 // pred_fallthru
          _
        %p338 = pneg %p61
        %p339 = pneg %p58
        %s340 = sand.u32 %s76, 1
        %s341 = scalar_lea.sflag [#allocation6], %s340
        %s342 = sand.u32 %s76, 1
        %s343 = smul.addr %s342, 8
        %s344 = scalar_lea.vmem [#allocation5], %s343
        %p345 = pneg %p89
        %p346 = pneg %p86
        %p347 = pneg %p117
        %p348 = pneg %p114
        %p349 = scmp.lt.s32.totalorder %s32, 0
        %s350 = scalar_select %p349, %s32, 0
        %s351 = scalar_lea.vmem %s3, %s350
        %p352 = pneg %p143
        %p353 = pneg %p140
        %p354 = pneg %p164
        %p355 = pneg %p161
        %p356 = pneg %p190
        %p357 = pneg %p187
        %p358 = pneg %p218
        %p359 = pneg %p215
        %s360 = sand.u32 %s205, 1
        %s361 = scalar_lea.sflag [#allocation7], %s360
        %s362 = sand.u32 %s205, 1
        %s363 = smul.addr %s362, 8
        %s364 = scalar_lea.vmem [#allocation13], %s363
        %s365 = smul.u32 16, %s33
        %p366 = scmp.lt.s32.totalorder %s32, 0
        %s367 = scalar_select %p366, %s32, 0
        %s368 = scalar_lea.vmem %s3, %s367
        %v369 = vld [vmem:[%s321] sm:$0xff]
        %v370 = vld [vmem:[#allocation8] sm:$0xff]
        %v371 = vld [vmem:[#allocation8 + $0x8] sm:$0xff]
        %v372 = vld [vmem:[#allocation8 + $0x10] sm:$0xff]
        %v373 = vld [vmem:[#allocation8 + $0x18] sm:$0xff]
        %v374 = vld [vmem:[#allocation8 + $0x20] sm:$0xff]
        %v375 = vld [vmem:[#allocation8 + $0x28] sm:$0xff]
        %v376 = vld [vmem:[#allocation8 + $0x30] sm:$0xff]
        %v377 = vld [vmem:[#allocation8 + $0x38] sm:$0xff]
        %v378 = vld [vmem:[#allocation8 + $0x40] sm:$0xff]
        %v379 = vld [vmem:[#allocation8 + $0x48] sm:$0xff]
        %v380 = vld [vmem:[#allocation8 + $0x50] sm:$0xff]
        %v381 = vld [vmem:[#allocation8 + $0x58] sm:$0xff]
        %v382 = vld [vmem:[#allocation8 + $0x60] sm:$0xff]
        %v383 = vld [vmem:[#allocation8 + $0x68] sm:$0xff]
        %v384 = vld [vmem:[#allocation8 + $0x70] sm:$0xff]
        %v385 = vld [vmem:[#allocation8 + $0x78] sm:$0xff]
        %386 = vmatprep.subr.mxu0 0.0
        %387 = vmatpush1.msra.mxu0 %v385
        %388 = vmatprep.subr.mxu0 0.0
        %389 = vmatpush1.msra.mxu0 %v384
        %390 = vmatprep.subr.mxu0 0.0
        %391 = vmatpush1.msra.mxu0 %v383
        %392 = vmatprep.subr.mxu0 0.0
        %393 = vmatpush1.msra.mxu0 %v382
        %394 = vmatprep.subr.mxu0 0.0
        %395 = vmatpush1.msra.mxu0 %v381
        %396 = vmatprep.subr.mxu0 0.0
        %397 = vmatpush1.msra.mxu0 %v380
        %398 = vmatprep.subr.mxu0 0.0
        %399 = vmatpush1.msra.mxu0 %v379
        %400 = vmatprep.subr.mxu0 0.0
        %401 = vmatpush1.msra.mxu0 %v378
        %402 = vmatprep.subr.mxu0 0.0
        %403 = vmatpush1.msra.mxu0 %v377
        %404 = vmatprep.subr.mxu0 0.0
        %405 = vmatpush1.msra.mxu0 %v376
        %406 = vmatprep.subr.mxu0 0.0
        %407 = vmatpush1.msra.mxu0 %v375
        %408 = vmatprep.subr.mxu0 0.0
        %409 = vmatpush1.msra.mxu0 %v374
        %410 = vmatprep.subr.mxu0 0.0
        %411 = vmatpush1.msra.mxu0 %v373
        %412 = vmatprep.subr.mxu0 0.0
        %413 = vmatpush1.msra.mxu0 %v372
        %414 = vmatprep.subr.mxu0 0.0
        %415 = vmatpush1.msra.mxu0 %v371
        %416 = vmatprep.subr.mxu0 0.0
        %417 = vmatpush1.msra.mxu0 %v370
        %418 = vmatprep.subr.mxu0 0.0
        %419 = vmatpush2.msra.mxu0 0.0
        %420 = vmatprep.subr.mxu0 0.0
        %421 = vmatpush2.msra.mxu0 0.0
        %422 = vmatprep.subr.mxu0 0.0
        %423 = vmatpush2.msra.mxu0 0.0
        %424 = vmatprep.subr.mxu0 0.0
        %425 = vmatpush2.msra.mxu0 0.0
        %426 = vmatprep.subr.mxu0 0.0
        %427 = vmatpush2.msra.mxu0 0.0
        %428 = vmatprep.subr.mxu0 0.0
        %429 = vmatpush2.msra.mxu0 0.0
        %430 = vmatprep.subr.mxu0 0.0
        %431 = vmatpush2.msra.mxu0 0.0
        %432 = vmatprep.subr.mxu0 0.0
        %433 = vmatpush2.msra.mxu0 0.0
        %434 = vmatprep.subr.mxu0 0.0
        %435 = vmatpush2.msra.mxu0 0.0
        %436 = vmatprep.subr.mxu0 0.0
        %437 = vmatpush2.msra.mxu0 0.0
        %438 = vmatprep.subr.mxu0 0.0
        %439 = vmatpush2.msra.mxu0 0.0
        %440 = vmatprep.subr.mxu0 0.0
        %441 = vmatpush2.msra.mxu0 0.0
        %442 = vmatprep.subr.mxu0 0.0
        %443 = vmatpush2.msra.mxu0 0.0
        %444 = vmatprep.subr.mxu0 0.0
        %445 = vmatpush2.msra.mxu0 0.0
        %446 = vmatprep.subr.mxu0 0.0
        %447 = vmatpush2.msra.mxu0 0.0
        %448 = vmatprep.subr.mxu0 0.0
        %449 = vmatpush2.msra.mxu0 0.0
        %450 = vmatprep.mubr.f32.mxu0 0.0
        %451 = vmatmul.mubr.f32.gmra.mxu0 %v369
        %v452 = vpop.f32.mrf.mxu0
        %v453 = vadd.f32 0.0, %v452
        %v454 = vpop.f32.mrf.mxu0
        %455 = vdwg.mxu0
        %p456 = scmp.eq.s32.totalorder %s33, 0
        // Predicated region
        $region61: #{tpu_custom_call.1} parent=43 // pred_check
          %p457 = pneg %p456
        $region62: #{tpu_custom_call.1} parent=43 // pred_check_branch
          %459 = sbr.rel (%p457) target = $region64
        $region63: #{tpu_custom_call.1} parent=43 // pred_region
          %v460 = vld [vmem:[%s368] sm:$0x1]
          %v462 = vlaneseq
          %v463 = vshrl.u32 %v462, 7
          %v464 = vsub.s32 0, %v463
          %v465 = vrot.slane %v460, %v464
          %v467 = vadd.f32 %v453, %v465
          %468 = vst [vmem:[#allocation2] sm:$0xff] %v467
        $region64: #{tpu_custom_call.1} parent=43 // pred_fallthru
          _
        %p469 = scmp.ne.s32.totalorder %s33, 0
        // Predicated region
        $region65: #{tpu_custom_call.1} parent=43 // pred_check
          %p470 = pneg %p469
        $region66: #{tpu_custom_call.1} parent=43 // pred_check_branch
          %472 = sbr.rel (%p470) target = $region68
        $region67: #{tpu_custom_call.1} parent=43 // pred_region
          %v473 = vld [vmem:[#allocation2] sm:$0xff]
          %v474 = vadd.f32 %v473, %v453
          %475 = vst [vmem:[#allocation2] sm:$0xff] %v474
        $region68: #{tpu_custom_call.1} parent=43 // pred_fallthru
          _
        %p476 = scmp.eq.s32.totalorder %s32, 0
        // Predicated region
        $region69: #{tpu_custom_call.1} parent=43 // pred_check
          %p477 = pneg %p476
        $region70: #{tpu_custom_call.1} parent=43 // pred_check_branch
          %479 = sbr.rel (%p477) target = $region72
        $region71: #{tpu_custom_call.1} parent=43 // pred_region
          %s480 = smul.u32 %s33, 128
          %s481 = scalar_lea.vmem [#allocation10], %s480
          %v482 = vld [vmem:[%s481] sm:$0xff]
          %v483 = vld [vmem:[%s481 + $0x8] sm:$0xff]
          %v484 = vld [vmem:[%s481 + $0x10] sm:$0xff]
          %v485 = vld [vmem:[%s481 + $0x18] sm:$0xff]
          %v486 = vld [vmem:[%s481 + $0x20] sm:$0xff]
          %v487 = vld [vmem:[%s481 + $0x28] sm:$0xff]
          %v488 = vld [vmem:[%s481 + $0x30] sm:$0xff]
          %v489 = vld [vmem:[%s481 + $0x38] sm:$0xff]
          %v490 = vld [vmem:[%s481 + $0x40] sm:$0xff]
          %v491 = vld [vmem:[%s481 + $0x48] sm:$0xff]
          %v492 = vld [vmem:[%s481 + $0x50] sm:$0xff]
          %v493 = vld [vmem:[%s481 + $0x58] sm:$0xff]
          %v494 = vld [vmem:[%s481 + $0x60] sm:$0xff]
          %v495 = vld [vmem:[%s481 + $0x68] sm:$0xff]
          %v496 = vld [vmem:[%s481 + $0x70] sm:$0xff]
          %v497 = vld [vmem:[%s481 + $0x78] sm:$0xff]
          %498 = vmatprep.subr.mxu0 0.0
          %499 = vmatpush1.msra.mxu0 %v497
          %500 = vmatprep.subr.mxu0 0.0
          %501 = vmatpush1.msra.mxu0 %v496
          %502 = vmatprep.subr.mxu0 0.0
          %503 = vmatpush1.msra.mxu0 %v495
          %504 = vmatprep.subr.mxu0 0.0
          %505 = vmatpush1.msra.mxu0 %v494
          %506 = vmatprep.subr.mxu0 0.0
          %507 = vmatpush1.msra.mxu0 %v493
          %508 = vmatprep.subr.mxu0 0.0
          %509 = vmatpush1.msra.mxu0 %v492
          %510 = vmatprep.subr.mxu0 0.0
          %511 = vmatpush1.msra.mxu0 %v491
          %512 = vmatprep.subr.mxu0 0.0
          %513 = vmatpush1.msra.mxu0 %v490
          %514 = vmatprep.subr.mxu0 0.0
          %515 = vmatpush1.msra.mxu0 %v489
          %516 = vmatprep.subr.mxu0 0.0
          %517 = vmatpush1.msra.mxu0 %v488
          %518 = vmatprep.subr.mxu0 0.0
          %519 = vmatpush1.msra.mxu0 %v487
          %520 = vmatprep.subr.mxu0 0.0
          %521 = vmatpush1.msra.mxu0 %v486
          %522 = vmatprep.subr.mxu0 0.0
          %523 = vmatpush1.msra.mxu0 %v485
          %524 = vmatprep.subr.mxu0 0.0
          %525 = vmatpush1.msra.mxu0 %v484
          %526 = vmatprep.subr.mxu0 0.0
          %527 = vmatpush1.msra.mxu0 %v483
          %528 = vmatprep.subr.mxu0 0.0
          %529 = vmatpush1.msra.mxu0 %v482
          %530 = vmatprep.subr.mxu0 0.0
          %531 = vmatpush2.msra.mxu0 0.0
          %532 = vmatprep.subr.mxu0 0.0
          %533 = vmatpush2.msra.mxu0 0.0
          %534 = vmatprep.subr.mxu0 0.0
          %535 = vmatpush2.msra.mxu0 0.0
          %536 = vmatprep.subr.mxu0 0.0
          %537 = vmatpush2.msra.mxu0 0.0
          %538 = vmatprep.subr.mxu0 0.0
          %539 = vmatpush2.msra.mxu0 0.0
          %540 = vmatprep.subr.mxu0 0.0
          %541 = vmatpush2.msra.mxu0 0.0
          %542 = vmatprep.subr.mxu0 0.0
          %543 = vmatpush2.msra.mxu0 0.0
          %544 = vmatprep.subr.mxu0 0.0
          %545 = vmatpush2.msra.mxu0 0.0
          %546 = vmatprep.subr.mxu0 0.0
          %547 = vmatpush2.msra.mxu0 0.0
          %548 = vmatprep.subr.mxu0 0.0
          %549 = vmatpush2.msra.mxu0 0.0
          %550 = vmatprep.subr.mxu0 0.0
          %551 = vmatpush2.msra.mxu0 0.0
          %552 = vmatprep.subr.mxu0 0.0
          %553 = vmatpush2.msra.mxu0 0.0
          %554 = vmatprep.subr.mxu0 0.0
          %555 = vmatpush2.msra.mxu0 0.0
          %556 = vmatprep.subr.mxu0 0.0
          %557 = vmatpush2.msra.mxu0 0.0
          %558 = vmatprep.subr.mxu0 0.0
          %559 = vmatpush2.msra.mxu0 0.0
          %560 = vmatprep.subr.mxu0 0.0
          %561 = vmatpush2.msra.mxu0 0.0
          %562 = vmatprep.mubr.f32.mxu0 0.0
          %563 = vmatmul.mubr.f32.gmra.mxu0 %v369
          %v564 = vpop.f32.mrf.mxu0
          %v565 = vadd.f32 0.0, %v564
          %v566 = vpop.f32.mrf.mxu0
          %567 = vdwg.mxu0
          // Predicated region
          $region73: #{tpu_custom_call.1} parent=71 // pred_check
            %p568 = pneg %p456
          $region74: #{tpu_custom_call.1} parent=71 // pred_check_branch
            %570 = sbr.rel (%p568) target = $region76
          $region75: #{tpu_custom_call.1} parent=71 // pred_region
            %571 = vst [vmem:[#allocation3] sm:$0xff] %v565
          $region76: #{tpu_custom_call.1} parent=71 // pred_fallthru
            _
          // Predicated region
          $region77: #{tpu_custom_call.1} parent=71 // pred_check
            %p572 = pneg %p469
          $region78: #{tpu_custom_call.1} parent=71 // pred_check_branch
            %574 = sbr.rel (%p572) target = $region80
          $region79: #{tpu_custom_call.1} parent=71 // pred_region
            %v575 = vld [vmem:[#allocation3] sm:$0xff]
            %v576 = vadd.f32 %v575, %v565
            %577 = vst [vmem:[#allocation3] sm:$0xff] %v576
          $region80: #{tpu_custom_call.1} parent=71 // pred_fallthru
            _
        $region72: #{tpu_custom_call.1} parent=43 // pred_fallthru
          _
        // Predicated region
        $region81: #{tpu_custom_call.1} parent=43 // pred_check
          %p578 = pneg %p456
        $region82: #{tpu_custom_call.1} parent=43 // pred_check_branch
          %580 = sbr.rel (%p578) target = $region84
        $region83: #{tpu_custom_call.1} parent=43 // pred_region
          %s581 = sld [smem:[#allocation4]]
          %v582 = vld [vmem:[#allocation3] sm:$0xff]
          %v583 = vld [vmem:[#allocation11] sm:$0xff]
          %v584 = vld [vmem:[#allocation11 + $0x8] sm:$0xff]
          %v585 = vld [vmem:[#allocation11 + $0x10] sm:$0xff]
          %v586 = vld [vmem:[#allocation11 + $0x18] sm:$0xff]
          %v587 = vld [vmem:[#allocation11 + $0x20] sm:$0xff]
          %v588 = vld [vmem:[#allocation11 + $0x28] sm:$0xff]
          %v589 = vld [vmem:[#allocation11 + $0x30] sm:$0xff]
          %v590 = vld [vmem:[#allocation11 + $0x38] sm:$0xff]
          %v591 = vld [vmem:[#allocation11 + $0x40] sm:$0xff]
          %v592 = vld [vmem:[#allocation11 + $0x48] sm:$0xff]
          %v593 = vld [vmem:[#allocation11 + $0x50] sm:$0xff]
          %v594 = vld [vmem:[#allocation11 + $0x58] sm:$0xff]
          %v595 = vld [vmem:[#allocation11 + $0x60] sm:$0xff]
          %v596 = vld [vmem:[#allocation11 + $0x68] sm:$0xff]
          %v597 = vld [vmem:[#allocation11 + $0x70] sm:$0xff]
          %v598 = vld [vmem:[#allocation11 + $0x78] sm:$0xff]
          %599 = vmatprep.subr.mxu0 0.0
          %600 = vmatpush1.msra.mxu0 %v598
          %601 = vmatprep.subr.mxu0 0.0
          %602 = vmatpush1.msra.mxu0 %v597
          %603 = vmatprep.subr.mxu0 0.0
          %604 = vmatpush1.msra.mxu0 %v596
          %605 = vmatprep.subr.mxu0 0.0
          %606 = vmatpush1.msra.mxu0 %v595
          %607 = vmatprep.subr.mxu0 0.0
          %608 = vmatpush1.msra.mxu0 %v594
          %609 = vmatprep.subr.mxu0 0.0
          %610 = vmatpush1.msra.mxu0 %v593
          %611 = vmatprep.subr.mxu0 0.0
          %612 = vmatpush1.msra.mxu0 %v592
          %613 = vmatprep.subr.mxu0 0.0
          %614 = vmatpush1.msra.mxu0 %v591
          %615 = vmatprep.subr.mxu0 0.0
          %616 = vmatpush1.msra.mxu0 %v590
          %617 = vmatprep.subr.mxu0 0.0
          %618 = vmatpush1.msra.mxu0 %v589
          %619 = vmatprep.subr.mxu0 0.0
          %620 = vmatpush1.msra.mxu0 %v588
          %621 = vmatprep.subr.mxu0 0.0
          %622 = vmatpush1.msra.mxu0 %v587
          %623 = vmatprep.subr.mxu0 0.0
          %624 = vmatpush1.msra.mxu0 %v586
          %625 = vmatprep.subr.mxu0 0.0
          %626 = vmatpush1.msra.mxu0 %v585
          %627 = vmatprep.subr.mxu0 0.0
          %628 = vmatpush1.msra.mxu0 %v584
          %629 = vmatprep.subr.mxu0 0.0
          %630 = vmatpush1.msra.mxu0 %v583
          %631 = vmatprep.subr.mxu0 0.0
          %632 = vmatpush2.msra.mxu0 0.0
          %633 = vmatprep.subr.mxu0 0.0
          %634 = vmatpush2.msra.mxu0 0.0
          %635 = vmatprep.subr.mxu0 0.0
          %636 = vmatpush2.msra.mxu0 0.0
          %637 = vmatprep.subr.mxu0 0.0
          %638 = vmatpush2.msra.mxu0 0.0
          %639 = vmatprep.subr.mxu0 0.0
          %640 = vmatpush2.msra.mxu0 0.0
          %641 = vmatprep.subr.mxu0 0.0
          %642 = vmatpush2.msra.mxu0 0.0
          %643 = vmatprep.subr.mxu0 0.0
          %644 = vmatpush2.msra.mxu0 0.0
          %645 = vmatprep.subr.mxu0 0.0
          %646 = vmatpush2.msra.mxu0 0.0
          %647 = vmatprep.subr.mxu0 0.0
          %648 = vmatpush2.msra.mxu0 0.0
          %649 = vmatprep.subr.mxu0 0.0
          %650 = vmatpush2.msra.mxu0 0.0
          %651 = vmatprep.subr.mxu0 0.0
          %652 = vmatpush2.msra.mxu0 0.0
          %653 = vmatprep.subr.mxu0 0.0
          %654 = vmatpush2.msra.mxu0 0.0
          %655 = vmatprep.subr.mxu0 0.0
          %656 = vmatpush2.msra.mxu0 0.0
          %657 = vmatprep.subr.mxu0 0.0
          %658 = vmatpush2.msra.mxu0 0.0
          %659 = vmatprep.subr.mxu0 0.0
          %660 = vmatpush2.msra.mxu0 0.0
          %661 = vmatprep.subr.mxu0 0.0
          %662 = vmatpush2.msra.mxu0 0.0
          %663 = vmatprep.mubr.f32.mxu0 0.0
          %664 = vmatmul.mubr.f32.gmra.mxu0 %v582
          %v665 = vpop.f32.mrf.mxu0
          %v666 = vadd.f32 0.0, %v665
          %v667 = vpop.f32.mrf.mxu0
          %668 = vdwg.mxu0
          %v669 = vld [vmem:[#allocation2] sm:$0xff]
          %v670 = vstv %s581
          %v671 = vmul.f32 %v666, %v670
          %v672 = vadd.f32 %v669, %v671
          %673 = vst [vmem:[%s364] sm:$0xff] %v672
        $region84: #{tpu_custom_call.1} parent=43 // pred_fallthru
          _
        %s674 = sand.u32 %s205, 1
        %s675 = scalar_lea.sflag [#allocation7], %s674
        %s676 = sand.u32 %s205, 1
        %s677 = smul.addr %s676, 8
        %s678 = scalar_lea.vmem [#allocation13], %s677
        // Predicated region
        $region85: #{tpu_custom_call.1} parent=43 // pred_check
          %p679 = pneg %p215
        $region86: #{tpu_custom_call.1} parent=43 // pred_check_branch
          %681 = sbr.rel (%p679) target = $region88
        $region87: #{tpu_custom_call.1} parent=43 // pred_region
          %s683 = ssub.s32 128, 128
          %684 = vsyncadd %s675, %s683
          %s685 = sadd.s32 %s32, %s31
          %s686 = smul.addr %s685, 128
          %s687 = scalar_lea.hbm %s6, %s686
          %s689 = sshll.u32 %s678, 4
          %s690 = int_to_ptr.vmem [resolvable:$true] %s689
          %692 = dma.vmem_to_hbm [thread:$0]  %s690, 128, %s687, %s675
        $region88: #{tpu_custom_call.1} parent=43 // pred_fallthru
          _
      $region44: #{tpu_custom_call.1} parent=5 // pred_fallthru
        _
      %p693 = scmp.le.s32.totalorder 2, %s21
      // Predicated region
      $region89: #{tpu_custom_call.1} parent=5 // pred_check
        %p694 = pneg %p693
      $region90: #{tpu_custom_call.1} parent=5 // pred_check_branch
        %696 = sbr.rel (%p694) target = $region92
      $region91: #{tpu_custom_call.1} parent=5 // pred_region
        %s697 = ssub.s32 %s21, 2
        // Predicated region
        $region93: #{tpu_custom_call.1} parent=91 // pred_check
          %p698 = pneg %p221
        $region94: #{tpu_custom_call.1} parent=91 // pred_check_branch
          %700 = sbr.rel (%p698) target = $region96
        $region95: #{tpu_custom_call.1} parent=91 // pred_region
          %s701 = sand.u32 %s206, 1
          %s702 = scalar_lea.sflag [#allocation7], %s701
          %s703 = sand.u32 %s206, 1
          %s704 = smul.addr %s703, 8
          %s705 = scalar_lea.vmem [#allocation13], %s704
          %706 = dma.done %s702, 128
        $region96: #{tpu_custom_call.1} parent=91 // pred_fallthru
          _
      $region92: #{tpu_custom_call.1} parent=5 // pred_fallthru
        _
    $region6: #{tpu_custom_call.1} parent=1 // loop_footer
      %s25 = sadd.s32 1, %s21
    $region7: #{tpu_custom_call.1} parent=1 // loop_footer_branch
      %20 = sbr.rel target = $region3
    $region8: #{tpu_custom_call.1} parent=1 // loop_exit
      _
    %707 = vsyncpa [#allocation6], 1
    %s708 = scalar_lea.sflag [#allocation6], 1
    %709 = vsyncpa %s708, 1
    %710 = vsyncpa [#allocation9], 1
    %711 = vsyncpa [#allocation12], 1
    %712 = vsyncpa [#allocation7], 1
    %s713 = scalar_lea.sflag [#allocation7], 1
    %714 = vsyncpa %s713, 1

</llo_original>
